<compile_context>
chip_gen: v5e
topology: v5e:2x2
jax: 0.10.0
libtpu: 0.0.40
codegen_flags: <defaults>
</compile_context>

<pallas_src>
import functools

import jax
import jax.numpy as jnp
import numpy as np
from jax.experimental import pallas as pl
from jax.experimental.pallas import tpu as pltpu

EPS = 1e-5


# --------------------------------------------------------------------------------------
# Kernel: one-pass stats  ->  one MXU matmul  ->  folded-RevIN epilogue
# --------------------------------------------------------------------------------------
def arima_fused_kernel(a_ref, mcoef_ref, c_ref, x_ref, out_ref):
    x = x_ref[...]                                   # (S, T)  raw (un-normalized) series tile
    seq_len = x.shape[0]
    inv_s = jnp.float32(1.0 / seq_len)

    # One-pass per-(batch,channel) stats over time (population variance, matches unbiased=False).
    s1 = jnp.sum(x, axis=0, keepdims=True)           # (1, T)   XLU reduces
    s2 = jnp.sum(x * x, axis=0, keepdims=True)       # (1, T)
    mean = s1 * inv_s
    var = jnp.maximum(s2 * inv_s - mean * mean, 0.0)
    stdev = jnp.sqrt(var + EPS)                      # (1, T)

    # Folded affine chain on the RAW series (RevIN norm+denorm folded into the epilogue):
    #   out = A @ x + mean * (1 - rowsum(A)) + stdev * c
    y = jnp.dot(a_ref[...], x, preferred_element_type=jnp.float32)       # (P, T)  MXU
    out_ref[...] = (y + mcoef_ref[...] * mean + c_ref[...] * stdev).astype(out_ref.dtype)


# --------------------------------------------------------------------------------------
# Host-side (init-time) fold of the linear chain into (A, mcoef, c) -- pure numpy, no JAX ops.
# --------------------------------------------------------------------------------------
def fold_ar_chain(w_seasonal, b_seasonal, w_trend, b_trend, seq_len, pred_len, kernel_size):
    S, P = seq_len, pred_len

    # Moving-average matrix M: torch AvgPool1d over a replicate-padded series (series_decomp).
    pad = (kernel_size - 1) // 2
    idx = np.clip(np.arange(S)[:, None] - pad + np.arange(kernel_size)[None, :], 0, S - 1)
    M = np.zeros((S, S), np.float64)
    np.add.at(
        M,
        (np.broadcast_to(np.arange(S)[:, None], (S, kernel_size)), idx),
        1.0 / kernel_size,
    )

    # First-difference matrix D (d=1): row 0 = identity, row t = e_t - e_{t-1}.
    D = np.eye(S)
    D[np.arange(1, S), np.arange(S - 1)] = -1.0

    # Cumulative-sum lower-triangular matrix (inverse difference).
    L = np.tril(np.ones((P, P)))
    I = np.eye(S)

    ws = np.asarray(w_seasonal, np.float64)
    wt = np.asarray(w_trend, np.float64)
    bs = np.asarray(b_seasonal, np.float64)
    bt = np.asarray(b_trend, np.float64)

    # out_pre_denorm = Ws (I - M) xn  +  L Wt D M xn  +  1_P (M[-1,:] xn)  +  (bs + L bt)
    A = ws @ (I - M) + L @ (wt @ (D @ M)) + np.ones((P, 1)) @ M[-1:, :]   # (P, S)
    c = (bs + L @ bt).reshape(P, 1)                                       # (P, 1)
    mcoef = 1.0 - A.sum(axis=1, keepdims=True)                            # (P, 1) = 1 - rowsum(A)

    return (jnp.asarray(A, jnp.float32),
            jnp.asarray(mcoef, jnp.float32),
            jnp.asarray(c, jnp.float32))


def _round_up(n, m):
    return ((n + m - 1) // m) * m


# --------------------------------------------------------------------------------------
# Wrapper: pack (B,S,C)->(S,B*C) lanes, pad to 128-dense lanes, tile + parallel grid.
# --------------------------------------------------------------------------------------
def arima_forward(x, folded_params, *, tile_bc_max=512):
    """x: (B, seq_len, C) float32.  folded_params = fold_ar_chain(...).  Returns (B, pred_len, C)."""
    A, mcoef, c = folded_params
    B, S, C = x.shape
    P = A.shape[0]
    BC = B * C

    # Lane-dense packing: pad BC up to a multiple of 128, pick a 128-multiple tile.
    bc128 = _round_up(BC, 128)
    tile_bc = min(tile_bc_max, bc128)
    bc_pad = _round_up(bc128, tile_bc)
    grid = bc_pad // tile_bc

    # Pack batch/channel into the lane axis, time as the contraction axis.
    x2d = jnp.transpose(x, (1, 0, 2)).reshape(S, BC).astype(jnp.float32)
    if bc_pad > BC:
        x2d = jnp.pad(x2d, ((0, 0), (0, bc_pad - BC)))   # zero lanes -> finite stats, sliced off below

    # Double-buffered f32 footprint estimate (+ headroom), bounded for v7x's 64 MiB VMEM.
    est = 4 * (2 * S * tile_bc + 2 * P * tile_bc + 2 * P * S + 4 * P * 128)
    vmem_bytes = int(min(max(2 * est, 16 * 1024 * 1024), 64 * 1024 * 1024))

    y2d = pl.pallas_call(
        arima_fused_kernel,
        out_shape=jax.ShapeDtypeStruct((P, bc_pad), jnp.float32),
        grid=(grid,),
        in_specs=[
            pl.BlockSpec((P, S), lambda i: (0, 0)),          # folded weight A (resident)
            pl.BlockSpec((P, 1), lambda i: (0, 0)),          # mean coefficient 1 - rowsum(A)
            pl.BlockSpec((P, 1), lambda i: (0, 0)),          # stdev coefficient c
            pl.BlockSpec((S, tile_bc), lambda i: (0, i)),    # packed series tile
        ],
        out_specs=pl.BlockSpec((P, tile_bc), lambda i: (0, i)),
        compiler_params=pltpu.CompilerParams(
            dimension_semantics=("parallel",),
            vmem_limit_bytes=vmem_bytes,
        ),
    )(A, mcoef, c, x2d)

    # (P, bc_pad) -> (B, P, C), dropping padded lanes.
    y2d = y2d[:, :BC]
    return jnp.transpose(y2d.reshape(P, B, C), (1, 0, 2)).astype(x.dtype)


# --------------------------------------------------------------------------------------
# Pure-JAX reference mirroring the PyTorch forward (label=None path)
# --------------------------------------------------------------------------------------
def ref_forward(x, ws, bs, wt, bt, k):
    B, S, C = x.shape
    mean = x.mean(axis=1, keepdims=True)
    stdev = jnp.sqrt(x.var(axis=1, keepdims=True) + EPS)
    xn = (x - mean) / stdev
    pad = (k - 1) // 2
    xp = jnp.concatenate(
        [jnp.repeat(xn[:, :1, :], pad, axis=1), xn, jnp.repeat(xn[:, -1:, :], pad, axis=1)],
        axis=1)
    trend = jnp.stack([xp[:, t:t + k, :].mean(axis=1) for t in range(S)], axis=1)   # (B,S,C)
    seasonal = xn - trend
    seasonal_out = jnp.einsum('bsc,ps->bpc', seasonal, ws) + bs[None, :, None]
    tr = jnp.swapaxes(trend, 1, 2)                                                  # (B,C,S)
    trend_diff = jnp.concatenate([tr[:, :, :1], tr[:, :, 1:] - tr[:, :, :-1]], axis=2)
    tfc = jnp.einsum('bcs,ps->bcp', trend_diff, wt) + bt[None, None, :]
    trend_out = tr[:, :, -1:] + jnp.cumsum(tfc, axis=2)                             # (B,C,P)
    out = jnp.swapaxes(trend_out, 1, 2) + seasonal_out
    return out * stdev + mean


if __name__ == "__main__":
    # Small config consistent with the module:
    #   seq_len=16, pred_len=8, enc_in(C)=4, moving_avg=5, d=1, features='M'
    B, S, P, C = 2, 16, 8, 4
    K_MA = 5

    key = jax.random.PRNGKey(0)
    kx, kws, kbs, kwt, kbt = jax.random.split(key, 5)

    x_enc = jax.random.normal(kx, (B, S, C), dtype=jnp.float32)

    # nn.Linear parameter shapes: (pred_len, seq_len) weight + (pred_len,) bias
    lim = 1.0 / np.sqrt(S)
    w_seasonal = jax.random.uniform(kws, (P, S), jnp.float32, -lim, lim)
    b_seasonal = jax.random.uniform(kbs, (P,), jnp.float32, -lim, lim)
    w_trend = jax.random.uniform(kwt, (P, S), jnp.float32, -lim, lim)
    b_trend = jax.random.uniform(kbt, (P,), jnp.float32, -lim, lim)

    # Fold the AR chain ONCE at init (not per forward call).
    folded = fold_ar_chain(w_seasonal, b_seasonal, w_trend, b_trend, S, P, K_MA)

    forward = jax.jit(functools.partial(arima_forward, folded_params=folded))

    out = forward(x_enc)
    out = jax.block_until_ready(out)

    ref = ref_forward(x_enc, w_seasonal, b_seasonal, w_trend, b_trend, K_MA)
    np.testing.assert_allclose(np.asarray(out), np.asarray(ref), rtol=1e-4, atol=1e-4)

    print("KERNEL_OK")
</pallas_src>

<mosaic_0001>
module attributes {stable_mosaic.version = 11 : i64} {
  func.func @arima_fused_kernel(%arg0: i32, %arg1: memref<8x16xf32, #tpu.memory_space<vmem>>, %arg2: memref<8x1xf32, #tpu.memory_space<vmem>>, %arg3: memref<8x1xf32, #tpu.memory_space<vmem>>, %arg4: memref<16x128xf32, #tpu.memory_space<vmem>>, %arg5: memref<8x128xf32, #tpu.memory_space<vmem>>) attributes {dimension_semantics = [#tpu.dimension_semantics<parallel>], iteration_bounds = array<i64: 1>, scalar_prefetch = 0 : i64, scratch_operands = 0 : i64, tpu.core_type = #tpu.core_type<tc>, window_params = [{pipeline_mode = #tpu.pipeline_mode<synchronous>, transform_indices = @transform_0, window_bounds = array<i64: 8, 16>}, {pipeline_mode = #tpu.pipeline_mode<synchronous>, transform_indices = @transform_1, window_bounds = array<i64: 8, 1>}, {pipeline_mode = #tpu.pipeline_mode<synchronous>, transform_indices = @transform_2, window_bounds = array<i64: 8, 1>}, {transform_indices = @transform_3, window_bounds = array<i64: 16, 128>}, {transform_indices = @transform_4, window_bounds = array<i64: 8, 128>}]} {
    %c0 = arith.constant 0 : index
    %c0_0 = arith.constant 0 : index
    %0 = vector.load %arg4[%c0, %c0_0] : memref<16x128xf32, #tpu.memory_space<vmem>>, vector<16x128xf32>
    %cst = arith.constant dense<0.000000e+00> : vector<128xf32>
    %1 = vector.multi_reduction <add>, %0, %cst [0] : vector<16x128xf32> to vector<128xf32>
    %2 = vector.shape_cast %1 : vector<128xf32> to vector<1x128xf32>
    %3 = arith.mulf %0, %0 : vector<16x128xf32>
    %cst_1 = arith.constant dense<0.000000e+00> : vector<128xf32>
    %4 = vector.multi_reduction <add>, %3, %cst_1 [0] : vector<16x128xf32> to vector<128xf32>
    %5 = vector.shape_cast %4 : vector<128xf32> to vector<1x128xf32>
    %cst_2 = arith.constant 6.250000e-02 : f32
    %6 = vector.broadcast %cst_2 : f32 to vector<1x128xf32>
    %7 = arith.mulf %2, %6 : vector<1x128xf32>
    %cst_3 = arith.constant 6.250000e-02 : f32
    %8 = vector.broadcast %cst_3 : f32 to vector<1x128xf32>
    %9 = arith.mulf %5, %8 : vector<1x128xf32>
    %10 = arith.mulf %7, %7 : vector<1x128xf32>
    %11 = arith.subf %9, %10 : vector<1x128xf32>
    %cst_4 = arith.constant 0.000000e+00 : f32
    %12 = vector.broadcast %cst_4 : f32 to vector<1x128xf32>
    %13 = arith.maximumf %11, %12 : vector<1x128xf32>
    %cst_5 = arith.constant 9.99999974E-6 : f32
    %14 = vector.broadcast %cst_5 : f32 to vector<1x128xf32>
    %15 = arith.addf %13, %14 : vector<1x128xf32>
    %16 = math.sqrt %15 : vector<1x128xf32>
    %c0_6 = arith.constant 0 : index
    %c0_7 = arith.constant 0 : index
    %17 = vector.load %arg1[%c0_6, %c0_7] : memref<8x16xf32, #tpu.memory_space<vmem>>, vector<8x16xf32>
    %cst_8 = arith.constant dense<0.000000e+00> : vector<8x128xf32>
    %18 = tpu.matmul %17, %0, %cst_8 {dimension_numbers = #tpu.dot_dimension_numbers<[1], [0], [0], [1], [0, 0, 1, 1], [], []>} : vector<8x16xf32>, vector<16x128xf32>, vector<8x128xf32> -> vector<8x128xf32>
    %c0_9 = arith.constant 0 : index
    %c0_10 = arith.constant 0 : index
    %19 = vector.load %arg2[%c0_9, %c0_10] : memref<8x1xf32, #tpu.memory_space<vmem>>, vector<8x1xf32>
    %20 = vector.broadcast %19 : vector<8x1xf32> to vector<8x128xf32>
    %21 = vector.broadcast %7 : vector<1x128xf32> to vector<8x128xf32>
    %22 = arith.mulf %20, %21 : vector<8x128xf32>
    %23 = arith.addf %18, %22 : vector<8x128xf32>
    %c0_11 = arith.constant 0 : index
    %c0_12 = arith.constant 0 : index
    %24 = vector.load %arg3[%c0_11, %c0_12] : memref<8x1xf32, #tpu.memory_space<vmem>>, vector<8x1xf32>
    %25 = vector.broadcast %24 : vector<8x1xf32> to vector<8x128xf32>
    %26 = vector.broadcast %16 : vector<1x128xf32> to vector<8x128xf32>
    %27 = arith.mulf %25, %26 : vector<8x128xf32>
    %28 = arith.addf %23, %27 : vector<8x128xf32>
    %c0_13 = arith.constant 0 : index
    %c0_14 = arith.constant 0 : index
    %29 = vector.load %arg5[%c0_13, %c0_14] : memref<8x128xf32, #tpu.memory_space<vmem>>, vector<8x128xf32>
    tpu.vector_store %arg5[%c0_13, %c0_14], %28 {strides = array<i32>} : memref<8x128xf32, #tpu.memory_space<vmem>>, vector<8x128xf32>,
    return
  }
  func.func @transform_0(%arg0: i32) -> (i32, i32) {
    %c0_i32 = arith.constant 0 : i32
    %c0_i32_0 = arith.constant 0 : i32
    %c0_i32_1 = arith.constant 0 : i32
    return %c0_i32, %c0_i32_0 : i32, i32
  }
  func.func @transform_1(%arg0: i32) -> (i32, i32) {
    %c0_i32 = arith.constant 0 : i32
    %c0_i32_0 = arith.constant 0 : i32
    %c0_i32_1 = arith.constant 0 : i32
    return %c0_i32, %c0_i32_0 : i32, i32
  }
  func.func @transform_2(%arg0: i32) -> (i32, i32) {
    %c0_i32 = arith.constant 0 : i32
    %c0_i32_0 = arith.constant 0 : i32
    %c0_i32_1 = arith.constant 0 : i32
    return %c0_i32, %c0_i32_0 : i32, i32
  }
  func.func @transform_3(%arg0: i32) -> (i32, i32) {
    %c0_i32 = arith.constant 0 : i32
    %c0_i32_0 = arith.constant 0 : i32
    return %c0_i32, %arg0 : i32, i32
  }
  func.func @transform_4(%arg0: i32) -> (i32, i32) {
    %c0_i32 = arith.constant 0 : i32
    %c0_i32_0 = arith.constant 0 : i32
    return %c0_i32, %arg0 : i32, i32
  }
}

</mosaic_0001>

<llo_original>
// kernel: arima_forward.1
$region0: #{arima_forward.1}
  #allocation0 [shape = 'u32[]', space=smem, size = 0x4, offset = 0x4, fixed_abs, tag = 'smem constant byte address 0x4 - core index']
  #allocation1 [shape = 'u32[72,128]{1,0:T(1,128)}', space=vmem, size = 0x9000, scoped, tag = 'internal scratch']
  %s0 = inlined_call_operand.vmem [shape: f32[8,16], index: 0, kind: input, shape index: {}]
  %s1 = inlined_call_operand.vmem [shape: f32[8,1], index: 1, kind: input, shape index: {}]
  %s2 = inlined_call_operand.vmem [shape: f32[8,1], index: 2, kind: input, shape index: {}]
  %s3 = inlined_call_operand.vmem [shape: f32[16,128], index: 3, kind: input, shape index: {}]
  %s4 = inlined_call_operand.vmem [shape: f32[8,128], index: 4, kind: output, shape index: {}]
  %s5 = sld [smem:[#allocation0]]
  $region26: #{arima_forward.1} parent=0
    _
  %s7 = ssub.s32 1, %s5
  %s8 = scalar_select 0, %s7, %s5
  // Predicated region
  $region2: #{arima_forward.1} parent=0 // pred_check
    _
  $region3: #{arima_forward.1} parent=0 // pred_check_branch
    %10 = sbr.rel (0) target = $region5
  $region4: #{arima_forward.1} parent=0 // pred_region
    _
  $region5: #{arima_forward.1} parent=0 // pred_fallthru
    _
  // Predicated region
  $region6: #{arima_forward.1} parent=0 // pred_check
    _
  $region7: #{arima_forward.1} parent=0 // pred_check_branch
    %12 = sbr.rel (0) target = $region9
  $region8: #{arima_forward.1} parent=0 // pred_region
    _
  $region9: #{arima_forward.1} parent=0 // pred_fallthru
    _
  // Predicated region
  $region10: #{arima_forward.1} parent=0 // pred_check
    _
  $region11: #{arima_forward.1} parent=0 // pred_check_branch
    %14 = sbr.rel (0) target = $region13
  $region12: #{arima_forward.1} parent=0 // pred_region
    _
  $region13: #{arima_forward.1} parent=0 // pred_fallthru
    _
  // Predicated region
  $region14: #{arima_forward.1} parent=0 // pred_check
    _
  $region15: #{arima_forward.1} parent=0 // pred_check_branch
    %16 = sbr.rel (0) target = $region17
  $region16: #{arima_forward.1} parent=0 // pred_region
    _
  $region17: #{arima_forward.1} parent=0 // pred_fallthru
    _
  %v17 = vld [vmem:[%s3] sm:$0xff]
  %v18 = vld [vmem:[%s3 + $0x8] sm:$0xff]
  %v19 = vadd.f32 %v17, %v18
  %v20 = vrot.slane %v19, 4
  %v21 = vadd.f32 %v19, %v20
  %v22 = vrot.slane %v21, 2
  %v23 = vadd.f32 %v21, %v22
  %v24 = vrot.slane %v23, 1
  %v25 = vadd.f32 %v23, %v24
  %v26 = vmul.f32 %v17, %v17
  %v27 = vmul.f32 %v18, %v18
  %v28 = vadd.f32 %v26, %v27
  %v29 = vrot.slane %v28, 4
  %v30 = vadd.f32 %v28, %v29
  %v31 = vrot.slane %v30, 2
  %v32 = vadd.f32 %v30, %v31
  %v33 = vrot.slane %v32, 1
  %v34 = vadd.f32 %v32, %v33
  %v35 = vmul.f32 %v25, 0.0625
  %v36 = vmul.f32 %v34, 0.0625
  %v37 = vmul.f32 %v35, %v35
  %v38 = vsub.f32 %v36, %v37
  %v39 = vmax.f32 %v38, 0.0
  %v40 = vadd.f32 %v39, 1e-05
  %v41 = vrsqrt.pop %v40
  %v42 = vmul.f32 %v41, %v40
  %v43 = vmul.f32 %v42, %v41
  %v44 = vmul.f32 0.5, %v43
  %v45 = vsub.f32 1.5, %v44
  %v46 = vmul.f32 %v41, %v45
  %v47 = vmul.f32 %v40, %v46
  %vm48 = vcmp.eq.f32.partialorder %v40, inf
  %v49 = vsel %vm48, %v40, %v47
  %vm50 = vcmp.eq.f32.partialorder %v40, 0.0
  %v51 = vand.u32 %v40, 2147483648
  %v52 = vsel %vm50, %v51, %v49
  %v53 = vld [vmem:[%s0] sm:$0xff]
  %v54 = vld [vmem:[%s1] sm:$0xff]
  %56 = vset.pattern.permute.xlu0 0
  %57 = vperm.xlu0 %56, %v54
  %v58 = vpop.permute.xlu0 %57
  %v60 = vmul.f32 %v58, %v35
  %vm61 = vcmask 130048
  %v63 = vsel %vm61, %v53, 0
  %65 = vmatpush.msra.mxu0 0.0
  %66 = vmatpush.msra.mxu0 0.0
  %67 = vmatpush.msra.mxu0 0.0
  %68 = vmatpush.msra.mxu0 0.0
  %69 = vmatpush.msra.mxu0 0.0
  %70 = vmatpush.msra.mxu0 0.0
  %71 = vmatpush.msra.mxu0 0.0
  %72 = vmatpush.msra.mxu0 0.0
  %73 = vmatpush.msra.mxu0 0.0
  %74 = vmatpush.msra.mxu0 0.0
  %75 = vmatpush.msra.mxu0 0.0
  %76 = vmatpush.msra.mxu0 0.0
  %77 = vmatpush.msra.mxu0 0.0
  %78 = vmatpush.msra.mxu0 0.0
  %79 = vmatpush.msra.mxu0 %v18
  %80 = vmatpush.msra.mxu0 %v17
  %81 = vmatmul.f32.gmra.mxu0 %v63
  %v82 = vpop.f32.mrf.mxu0
  %v83 = vadd.f32 %v60, %v82
  %84 = vdwg.mxu0
  %v85 = vld [vmem:[%s2] sm:$0xff]
  %87 = vset.pattern.permute.xlu0 0
  %88 = vperm.xlu0 %87, %v85
  %v89 = vpop.permute.xlu0 %88
  %v91 = vmul.f32 %v89, %v52
  %v92 = vadd.f32 %v83, %v91
  %93 = vst [vmem:[%s4] sm:$0xff] %v92
  // Predicated region
  $region18: #{arima_forward.1} parent=0 // pred_check
    _
  $region19: #{arima_forward.1} parent=0 // pred_check_branch
    %95 = sbr.rel (0) target = $region21
  $region20: #{arima_forward.1} parent=0 // pred_region
    _
  $region21: #{arima_forward.1} parent=0 // pred_fallthru
    _
  // Predicated region
  $region22: #{arima_forward.1} parent=0 // pred_check
    _
  $region23: #{arima_forward.1} parent=0 // pred_check_branch
    %97 = sbr.rel (0) target = $region25
  $region24: #{arima_forward.1} parent=0 // pred_region
    _
  $region25: #{arima_forward.1} parent=0 // pred_fallthru
    _

</llo_original>
